<compile_context>
chip_gen: v7x
topology: tpu7x:2x2x1
jax: 0.10.0
libtpu: 0.0.40
codegen_flags: <defaults>
</compile_context>

<pallas_src>
import math

import jax
import jax.numpy as jnp
from jax.experimental import pallas as pl
from jax.experimental.pallas import tpu as pltpu

_LANE = 128
_SUBLANE = 8


def _mlp_kernel(x_ref, w_ref, o_ref):
    # Single lane-dense matmul: [tile_m, xdim] @ [xdim, ydim_pad] -> [tile_m, ydim_pad]
    o_ref[...] = jnp.dot(
        x_ref[...], w_ref[...], preferred_element_type=jnp.float32
    ).astype(o_ref.dtype)


def rahimi_recht_forward(x, weights, *, tile_m=512):
    """Forward pass of the stacked bias-free linear layers with one Pallas kernel.

    x:        [N, xdim] float32
    weights:  list of arrays, weights[k] has shape [out_k, in_k] (PyTorch Linear layout)
    returns:  [N, ydim] float32  (ydim == weights[-1].shape[0])
    """
    N, xdim = x.shape
    ydim = weights[-1].shape[0]

    # --- Fold the bias-free linear chain into one effective weight (wrapper-side, tiny). ---
    # y = x @ W0^T @ W1^T ... = x @ (W_{L-1} @ ... @ W0)^T
    w_eff = jnp.asarray(weights[0], jnp.float32)
    for w in weights[1:]:
        w_eff = jnp.asarray(w, jnp.float32) @ w_eff      # [out_k, xdim]
    w_eff_t = w_eff.T                                     # [xdim, ydim], pre-transposed

    # --- Lane-dense output: pad output features to a multiple of 128 lanes. ---
    ydim_pad = -(-ydim // _LANE) * _LANE
    if ydim_pad != ydim:
        w_eff_t = jnp.pad(w_eff_t, ((0, 0), (0, ydim_pad - ydim)))

    # --- Pad / size the sample axis so it tiles evenly with a large tile. ---
    tile_m = max(_SUBLANE, (tile_m // _SUBLANE) * _SUBLANE)
    if N >= tile_m:
        n_pad = -(-N // tile_m) * tile_m
    else:
        n_pad = -(-N // _SUBLANE) * _SUBLANE
        tile_m = n_pad
    x_p = jnp.asarray(x, jnp.float32)
    if n_pad != N:
        x_p = jnp.pad(x_p, ((0, n_pad - N), (0, 0)))

    grid = (n_pad // tile_m,)

    out = pl.pallas_call(
        _mlp_kernel,
        out_shape=jax.ShapeDtypeStruct((n_pad, ydim_pad), jnp.float32),
        grid_spec=pltpu.PrefetchScalarGridSpec(
            num_scalar_prefetch=0,
            grid=grid,
            in_specs=[
                pl.BlockSpec((tile_m, xdim), lambda i: (i, 0)),
                # Effective weight: full-array block, resident across the grid.
                pl.BlockSpec((xdim, ydim_pad), lambda i: (0, 0)),
            ],
            out_specs=pl.BlockSpec((tile_m, ydim_pad), lambda i: (i, 0)),
        ),
        compiler_params=pltpu.CompilerParams(
            dimension_semantics=("parallel",),
        ),
    )(x_p, w_eff_t)

    return out[:N, :ydim]


def init_weights(key, xdim=6, wdim=6, ydim=10, num_layers=2):
    """Deterministic re-implementation of the module's weight init.

    layers[0]:       Linear(xdim -> wdim, bias=False)
    layers[1..L-2]:  Linear(wdim -> wdim, bias=False)
    layers[L-1]:     Linear(wdim -> ydim, bias=False)
    Each weight ~ N(0, 1); divided by sqrt(wdim) iff num_layers > 2.
    """
    shapes = [(wdim, xdim)]
    for _ in range(num_layers - 2):
        shapes.append((wdim, wdim))
    shapes.append((ydim, wdim))

    keys = jax.random.split(key, len(shapes))
    scale = 1.0 / math.sqrt(wdim) if num_layers > 2 else 1.0
    return [jax.random.normal(k, s, dtype=jnp.float32) * scale
            for k, s in zip(keys, shapes)]


def _reference(x, weights):
    h = x
    for w in weights:
        h = h @ w.T
    return h


if __name__ == "__main__":
    # Module defaults: xdim=6, wdim=6, ydim=10, nsamples=1000.
    xdim, wdim, ydim = 6, 6, 10
    batch = 1000  # matches nsamples default; exercises the pad-to-tile path (grid=(2,))

    root = jax.random.PRNGKey(0)
    k_x, k_w2, k_w3 = jax.random.split(root, 3)
    x = jax.random.normal(k_x, (batch, xdim), dtype=jnp.float32)

    # num_layers = 2 (module default)
    weights2 = init_weights(k_w2, xdim=xdim, wdim=wdim, ydim=ydim, num_layers=2)
    y2 = jax.block_until_ready(rahimi_recht_forward(x, weights2))
    assert y2.shape == (batch, ydim)
    assert jnp.allclose(y2, _reference(x, weights2), atol=1e-4, rtol=1e-4), \
        "Pallas output mismatch vs reference (num_layers=2)"

    # num_layers = 3 (checks the folded chain + sqrt(wdim) init scaling)
    weights3 = init_weights(k_w3, xdim=xdim, wdim=wdim, ydim=ydim, num_layers=3)
    y3 = jax.block_until_ready(rahimi_recht_forward(x, weights3))
    assert y3.shape == (batch, ydim)
    assert jnp.allclose(y3, _reference(x, weights3), atol=1e-4, rtol=1e-4), \
        "Pallas output mismatch vs reference (num_layers=3)"

    print("KERNEL_OK")
</pallas_src>

<mosaic_0001>
module attributes {stable_mosaic.version = 11 : i64} {
  func.func @_mlp_kernel(%arg0: i32, %arg1: memref<512x6xf32, #tpu.memory_space<vmem>>, %arg2: memref<6x128xf32, #tpu.memory_space<vmem>>, %arg3: memref<512x128xf32, #tpu.memory_space<vmem>>) attributes {dimension_semantics = [#tpu.dimension_semantics<parallel>], iteration_bounds = array<i64: 2>, scalar_prefetch = 0 : i64, scratch_operands = 0 : i64, tpu.core_type = #tpu.core_type<tc>, window_params = [{transform_indices = @transform_0, window_bounds = array<i64: 512, 6>}, {pipeline_mode = #tpu.pipeline_mode<synchronous>, transform_indices = @transform_1, window_bounds = array<i64: 6, 128>}, {transform_indices = @transform_2, window_bounds = array<i64: 512, 128>}]} {
    %c0 = arith.constant 0 : index
    %c0_0 = arith.constant 0 : index
    %0 = vector.load %arg1[%c0, %c0_0] : memref<512x6xf32, #tpu.memory_space<vmem>>, vector<512x6xf32>
    %c0_1 = arith.constant 0 : index
    %c0_2 = arith.constant 0 : index
    %1 = vector.load %arg2[%c0_1, %c0_2] : memref<6x128xf32, #tpu.memory_space<vmem>>, vector<6x128xf32>
    %cst = arith.constant dense<0.000000e+00> : vector<512x128xf32>
    %2 = tpu.matmul %0, %1, %cst {dimension_numbers = #tpu.dot_dimension_numbers<[1], [0], [0], [1], [0, 0, 1, 1], [], []>} : vector<512x6xf32>, vector<6x128xf32>, vector<512x128xf32> -> vector<512x128xf32>
    %c0_3 = arith.constant 0 : index
    %c0_4 = arith.constant 0 : index
    %3 = vector.load %arg3[%c0_3, %c0_4] : memref<512x128xf32, #tpu.memory_space<vmem>>, vector<512x128xf32>
    tpu.vector_store %arg3[%c0_3, %c0_4], %2 {strides = array<i32>} : memref<512x128xf32, #tpu.memory_space<vmem>>, vector<512x128xf32>,
    return
  }
  func.func @transform_0(%arg0: i32) -> (i32, i32) {
    %c0_i32 = arith.constant 0 : i32
    %c0_i32_0 = arith.constant 0 : i32
    return %arg0, %c0_i32 : i32, i32
  }
  func.func @transform_1(%arg0: i32) -> (i32, i32) {
    %c0_i32 = arith.constant 0 : i32
    %c0_i32_0 = arith.constant 0 : i32
    %c0_i32_1 = arith.constant 0 : i32
    return %c0_i32, %c0_i32_0 : i32, i32
  }
  func.func @transform_2(%arg0: i32) -> (i32, i32) {
    %c0_i32 = arith.constant 0 : i32
    %c0_i32_0 = arith.constant 0 : i32
    return %arg0, %c0_i32 : i32, i32
  }
}

</mosaic_0001>

<llo_original>
// kernel: tpu_custom_call.1
$region0: #{tpu_custom_call.1}
  #allocation0 [shape = 'u32[]', space=smem, size = 0x4, offset = 0x4, fixed_abs, tag = 'smem constant byte address 0x4 - core index']
  #allocation1 [shape = 'u32[144,128]{1,0:T(1,128)}', space=vmem, size = 0x12000, scoped, tag = 'internal scratch']
  %s0 = inlined_call_operand.vmem [shape: f32[1024,6], index: 0, kind: input, shape index: {}]
  %s1 = inlined_call_operand.vmem [shape: f32[6,128], index: 1, kind: input, shape index: {}]
  %s2 = inlined_call_operand.hbm [shape: f32[1024,128], index: 2, kind: output, shape index: {}]
  %s3 = sld [smem:[#allocation0]]
  $region41: #{tpu_custom_call.1} parent=0
    _
  %s5 = ssub.s32 1, %s3
  %s6 = scalar_select 0, %s5, %s3
  $region1: #{tpu_custom_call.1} parent=0
    #allocation2 [shape = 'u8[524288]{0}', space=vmem, size = 0x80000, scoped, tag = 'output window, operand 0']
    #allocation3 [shape = 's32[2]{0}', space=sflag, size = 0x8, scoped, tag = 'scoped memory for tpu_custom_call.1']
    %7 = vsyncpa [#allocation3], 0
    %s8 = scalar_lea.sflag [#allocation3], 1
    %9 = vsyncpa %s8, 0
    loop: start=0, step=1, limit=4
    $region2: #{tpu_custom_call.1} parent=1 // loop_pre_header
      _
    $region3: #{tpu_custom_call.1} parent=1 // loop_header
      %s11 = sphi 0, %s15
      %p12 = scmp.ge.s32.totalorder %s11, 4
      %s21 = sphi 0, %s23
      %s24 = sphi 0, %s21
      %s25 = sphi 0, %s24
      %s41 = sphi 0, %s25
      %s45 = sphi 0, %s45
      %s47 = sphi 0, %s45
      %s48 = sphi 0, %s47
      %s62 = sphi 0, %s48
      %s68 = sphi 0, %s70
      %s71 = sphi 0, %s68
      %s72 = sphi 0, %s71
      %s88 = sphi 0, %s72
    $region4: #{tpu_custom_call.1} parent=1 // loop_header_branch
      %14 = sbr.rel (%p12) target = $region8
    $region5: #{tpu_custom_call.1} parent=1 // loop_body
      %s16 = ssub.s32 %s11, 1
      %s17 = ssub.s32 %s11, 2
      %s18 = sadd.s32 %s11, 1
      %s19 = ssub.s32 %s11, %s18
      %p20 = scmp.eq.s32.totalorder %s19, 0
      %s22 = sadd.s32 %s21, 1
      %s23 = scalar_select %p20, %s21, %s22
      %p26 = pneg %p20
      %p27 = scmp.eq.s32.totalorder %s11, 1
      %p28 = por %p26, %p27
      %p29 = scmp.ne.s32.totalorder %s21, %s24
      %p30 = scmp.eq.s32.totalorder %s11, 0
      %p31 = por %p29, %p30
      %p32 = scmp.ne.s32.totalorder %s21, %s24
      %p33 = scmp.eq.s32.totalorder %s16, 1
      %p34 = por %p32, %p33
      %p35 = scmp.ne.s32.totalorder %s24, %s25
      %p36 = scmp.eq.s32.totalorder %s16, 0
      %p37 = por %p35, %p36
      %p38 = scmp.ne.s32.totalorder %s24, %s25
      %p39 = scmp.eq.s32.totalorder %s17, 1
      %p40 = por %p38, %p39
      %p42 = scmp.ne.s32.totalorder %s25, %s41
      %p43 = scmp.eq.s32.totalorder %s17, 0
      %p44 = por %p42, %p43
      %s46 = sadd.s32 %s45, 1
      %p49 = scmp.eq.s32.totalorder %s11, 1
      %p50 = scmp.ne.s32.totalorder %s45, %s47
      %p51 = scmp.eq.s32.totalorder %s11, 0
      %p52 = por %p50, %p51
      %p53 = scmp.ne.s32.totalorder %s45, %s47
      %p54 = scmp.eq.s32.totalorder %s16, 1
      %p55 = por %p53, %p54
      %p56 = scmp.ne.s32.totalorder %s47, %s48
      %p57 = scmp.eq.s32.totalorder %s16, 0
      %p58 = por %p56, %p57
      %p59 = scmp.ne.s32.totalorder %s47, %s48
      %p60 = scmp.eq.s32.totalorder %s17, 1
      %p61 = por %p59, %p60
      %p63 = scmp.ne.s32.totalorder %s48, %s62
      %p64 = scmp.eq.s32.totalorder %s17, 0
      %p65 = por %p63, %p64
      %s66 = ssub.s32 %s11, %s18
      %p67 = scmp.eq.s32.totalorder %s66, 0
      %s69 = sadd.s32 %s68, 1
      %s70 = scalar_select %p67, %s68, %s69
      %p73 = pneg %p67
      %p74 = scmp.eq.s32.totalorder %s11, 1
      %p75 = por %p73, %p74
      %p76 = scmp.ne.s32.totalorder %s68, %s71
      %p77 = scmp.eq.s32.totalorder %s11, 0
      %p78 = por %p76, %p77
      %p79 = scmp.ne.s32.totalorder %s68, %s71
      %p80 = scmp.eq.s32.totalorder %s16, 1
      %p81 = por %p79, %p80
      %p82 = scmp.ne.s32.totalorder %s71, %s72
      %p83 = scmp.eq.s32.totalorder %s16, 0
      %p84 = por %p82, %p83
      %p85 = scmp.ne.s32.totalorder %s71, %s72
      %p86 = scmp.eq.s32.totalorder %s17, 1
      %p87 = por %p85, %p86
      %p89 = scmp.ne.s32.totalorder %s72, %s88
      %p90 = scmp.eq.s32.totalorder %s17, 0
      %p91 = por %p89, %p90
      %p92 = scmp.le.s32.totalorder 1, %s11
      %p93 = scmp.lt.s32.totalorder %s11, 3
      %p94 = pnand %p92, %p93
      %p95 = pneg %p94
      // Predicated region
      $region9: #{tpu_custom_call.1} parent=5 // pred_check
        _
      $region10: #{tpu_custom_call.1} parent=5 // pred_check_branch
        %97 = sbr.rel (%p94) target = $region12
      $region11: #{tpu_custom_call.1} parent=5 // pred_region
        %s98 = ssub.s32 %s11, 1
        // Predicated region
        $region13: #{tpu_custom_call.1} parent=11 // pred_check
          %p99 = pneg %p58
        $region14: #{tpu_custom_call.1} parent=11 // pred_check_branch
          %101 = sbr.rel (%p99) target = $region16
        $region15: #{tpu_custom_call.1} parent=11 // pred_region
          _
        $region16: #{tpu_custom_call.1} parent=11 // pred_fallthru
          _
      $region12: #{tpu_custom_call.1} parent=5 // pred_fallthru
        _
      %p102 = scmp.lt.s32.totalorder %s11, 2
      // Predicated region
      $region17: #{tpu_custom_call.1} parent=5 // pred_check
        %p103 = pneg %p102
      $region18: #{tpu_custom_call.1} parent=5 // pred_check_branch
        %105 = sbr.rel (%p103) target = $region20
      $region19: #{tpu_custom_call.1} parent=5 // pred_region
        // Predicated region
        $region21: #{tpu_custom_call.1} parent=19 // pred_check
          %p106 = pneg %p31
        $region22: #{tpu_custom_call.1} parent=19 // pred_check_branch
          %108 = sbr.rel (%p106) target = $region24
        $region23: #{tpu_custom_call.1} parent=19 // pred_region
          %s109 = smul.u32 64, %s11
          %p110 = scmp.lt.s32.totalorder %s109, 127
          %s111 = scalar_select %p110, %s109, 127
          %s112 = smul.addr %s111, 8
          %s113 = scalar_lea.vmem %s0, %s112
          %s114 = smul.u32 64, %s11
        $region24: #{tpu_custom_call.1} parent=19 // pred_fallthru
          _
      $region20: #{tpu_custom_call.1} parent=5 // pred_fallthru
        _
      %p115 = scmp.le.s32.totalorder 1, %s11
      %p116 = scmp.lt.s32.totalorder %s11, 3
      %p117 = pnand %p115, %p116
      %p118 = pneg %p117
      // Predicated region
      $region25: #{tpu_custom_call.1} parent=5 // pred_check
        _
      $region26: #{tpu_custom_call.1} parent=5 // pred_check_branch
        %120 = sbr.rel (%p117) target = $region28
      $region27: #{tpu_custom_call.1} parent=5 // pred_region
        %s121 = ssub.s32 %s11, 1
        %s122 = smul.u32 64, %s16
        %p123 = scmp.lt.s32.totalorder %s122, 127
        %s124 = scalar_select %p123, %s122, 127
        %s125 = smul.addr %s124, 8
        %s126 = scalar_lea.vmem %s0, %s125
        %p127 = pneg %p37
        %p128 = pneg %p34
        %p129 = pneg %p58
        %p130 = pneg %p55
        %p131 = pneg %p84
        %p132 = pneg %p81
        %s133 = sand.u32 %s71, 1
        %s134 = scalar_lea.sflag [#allocation3], %s133
        %s135 = sand.u32 %s71, 1
        %s136 = smul.addr %s135, 512
        %s137 = scalar_lea.vmem [#allocation2], %s136
        %s138 = smul.u32 64, %s16
        %p139 = scmp.lt.s32.totalorder %s138, 127
        %s140 = scalar_select %p139, %s138, 127
        %s141 = smul.addr %s140, 8
        %s142 = scalar_lea.vmem %s0, %s141
        %s143 = smul.u32 64, %s16
        %s144 = smul.u32 64, %s16
        %v145 = vld [vmem:[%s142] sm:$0xff]
        %v146 = vld [vmem:[%s142 + $0x8] sm:$0xff]
        %v147 = vld [vmem:[%s142 + $0x10] sm:$0xff]
        %v148 = vld [vmem:[%s142 + $0x18] sm:$0xff]
        %v149 = vld [vmem:[%s142 + $0x20] sm:$0xff]
        %v150 = vld [vmem:[%s142 + $0x28] sm:$0xff]
        %v151 = vld [vmem:[%s142 + $0x30] sm:$0xff]
        %v152 = vld [vmem:[%s142 + $0x38] sm:$0xff]
        %v153 = vld [vmem:[%s142 + $0x40] sm:$0xff]
        %v154 = vld [vmem:[%s142 + $0x48] sm:$0xff]
        %v155 = vld [vmem:[%s142 + $0x50] sm:$0xff]
        %v156 = vld [vmem:[%s142 + $0x58] sm:$0xff]
        %v157 = vld [vmem:[%s142 + $0x60] sm:$0xff]
        %v158 = vld [vmem:[%s142 + $0x68] sm:$0xff]
        %v159 = vld [vmem:[%s142 + $0x70] sm:$0xff]
        %v160 = vld [vmem:[%s142 + $0x78] sm:$0xff]
        %v161 = vld [vmem:[%s142 + $0x80] sm:$0xff]
        %v162 = vld [vmem:[%s142 + $0x88] sm:$0xff]
        %v163 = vld [vmem:[%s142 + $0x90] sm:$0xff]
        %v164 = vld [vmem:[%s142 + $0x98] sm:$0xff]
        %v165 = vld [vmem:[%s142 + $0xa0] sm:$0xff]
        %v166 = vld [vmem:[%s142 + $0xa8] sm:$0xff]
        %v167 = vld [vmem:[%s142 + $0xb0] sm:$0xff]
        %v168 = vld [vmem:[%s142 + $0xb8] sm:$0xff]
        %v169 = vld [vmem:[%s142 + $0xc0] sm:$0xff]
        %v170 = vld [vmem:[%s142 + $0xc8] sm:$0xff]
        %v171 = vld [vmem:[%s142 + $0xd0] sm:$0xff]
        %v172 = vld [vmem:[%s142 + $0xd8] sm:$0xff]
        %v173 = vld [vmem:[%s142 + $0xe0] sm:$0xff]
        %v174 = vld [vmem:[%s142 + $0xe8] sm:$0xff]
        %v175 = vld [vmem:[%s142 + $0xf0] sm:$0xff]
        %v176 = vld [vmem:[%s142 + $0xf8] sm:$0xff]
        %v177 = vld [vmem:[%s142 + $0x100] sm:$0xff]
        %v178 = vld [vmem:[%s142 + $0x108] sm:$0xff]
        %v179 = vld [vmem:[%s142 + $0x110] sm:$0xff]
        %v180 = vld [vmem:[%s142 + $0x118] sm:$0xff]
        %v181 = vld [vmem:[%s142 + $0x120] sm:$0xff]
        %v182 = vld [vmem:[%s142 + $0x128] sm:$0xff]
        %v183 = vld [vmem:[%s142 + $0x130] sm:$0xff]
        %v184 = vld [vmem:[%s142 + $0x138] sm:$0xff]
        %v185 = vld [vmem:[%s142 + $0x140] sm:$0xff]
        %v186 = vld [vmem:[%s142 + $0x148] sm:$0xff]
        %v187 = vld [vmem:[%s142 + $0x150] sm:$0xff]
        %v188 = vld [vmem:[%s142 + $0x158] sm:$0xff]
        %v189 = vld [vmem:[%s142 + $0x160] sm:$0xff]
        %v190 = vld [vmem:[%s142 + $0x168] sm:$0xff]
        %v191 = vld [vmem:[%s142 + $0x170] sm:$0xff]
        %v192 = vld [vmem:[%s142 + $0x178] sm:$0xff]
        %v193 = vld [vmem:[%s142 + $0x180] sm:$0xff]
        %v194 = vld [vmem:[%s142 + $0x188] sm:$0xff]
        %v195 = vld [vmem:[%s142 + $0x190] sm:$0xff]
        %v196 = vld [vmem:[%s142 + $0x198] sm:$0xff]
        %v197 = vld [vmem:[%s142 + $0x1a0] sm:$0xff]
        %v198 = vld [vmem:[%s142 + $0x1a8] sm:$0xff]
        %v199 = vld [vmem:[%s142 + $0x1b0] sm:$0xff]
        %v200 = vld [vmem:[%s142 + $0x1b8] sm:$0xff]
        %v201 = vld [vmem:[%s142 + $0x1c0] sm:$0xff]
        %v202 = vld [vmem:[%s142 + $0x1c8] sm:$0xff]
        %v203 = vld [vmem:[%s142 + $0x1d0] sm:$0xff]
        %v204 = vld [vmem:[%s142 + $0x1d8] sm:$0xff]
        %v205 = vld [vmem:[%s142 + $0x1e0] sm:$0xff]
        %v206 = vld [vmem:[%s142 + $0x1e8] sm:$0xff]
        %v207 = vld [vmem:[%s142 + $0x1f0] sm:$0xff]
        %v208 = vld [vmem:[%s142 + $0x1f8] sm:$0xff]
        %v209 = vld [vmem:[%s1] sm:$0x3f]
        %vm210 = vcmask 48128
        %v212 = vsel %vm210, %v145, 0
        %v215 = vsel %vm210, %v146, 0
        %v218 = vsel %vm210, %v147, 0
        %v221 = vsel %vm210, %v148, 0
        %v224 = vsel %vm210, %v149, 0
        %v227 = vsel %vm210, %v150, 0
        %v230 = vsel %vm210, %v151, 0
        %v233 = vsel %vm210, %v152, 0
        %v236 = vsel %vm210, %v153, 0
        %v239 = vsel %vm210, %v154, 0
        %v242 = vsel %vm210, %v155, 0
        %v245 = vsel %vm210, %v156, 0
        %v248 = vsel %vm210, %v157, 0
        %v251 = vsel %vm210, %v158, 0
        %v254 = vsel %vm210, %v159, 0
        %v257 = vsel %vm210, %v160, 0
        %v260 = vsel %vm210, %v161, 0
        %v263 = vsel %vm210, %v162, 0
        %v266 = vsel %vm210, %v163, 0
        %v269 = vsel %vm210, %v164, 0
        %v272 = vsel %vm210, %v165, 0
        %v275 = vsel %vm210, %v166, 0
        %v278 = vsel %vm210, %v167, 0
        %v281 = vsel %vm210, %v168, 0
        %v284 = vsel %vm210, %v169, 0
        %v287 = vsel %vm210, %v170, 0
        %v290 = vsel %vm210, %v171, 0
        %v293 = vsel %vm210, %v172, 0
        %v296 = vsel %vm210, %v173, 0
        %v299 = vsel %vm210, %v174, 0
        %v302 = vsel %vm210, %v175, 0
        %v305 = vsel %vm210, %v176, 0
        %v308 = vsel %vm210, %v177, 0
        %v311 = vsel %vm210, %v178, 0
        %v314 = vsel %vm210, %v179, 0
        %v317 = vsel %vm210, %v180, 0
        %v320 = vsel %vm210, %v181, 0
        %v323 = vsel %vm210, %v182, 0
        %v326 = vsel %vm210, %v183, 0
        %v329 = vsel %vm210, %v184, 0
        %v332 = vsel %vm210, %v185, 0
        %v335 = vsel %vm210, %v186, 0
        %v338 = vsel %vm210, %v187, 0
        %v341 = vsel %vm210, %v188, 0
        %v344 = vsel %vm210, %v189, 0
        %v347 = vsel %vm210, %v190, 0
        %v350 = vsel %vm210, %v191, 0
        %v353 = vsel %vm210, %v192, 0
        %v356 = vsel %vm210, %v193, 0
        %v359 = vsel %vm210, %v194, 0
        %v362 = vsel %vm210, %v195, 0
        %v365 = vsel %vm210, %v196, 0
        %v368 = vsel %vm210, %v197, 0
        %v371 = vsel %vm210, %v198, 0
        %v374 = vsel %vm210, %v199, 0
        %v377 = vsel %vm210, %v200, 0
        %v380 = vsel %vm210, %v201, 0
        %v383 = vsel %vm210, %v202, 0
        %v386 = vsel %vm210, %v203, 0
        %v389 = vsel %vm210, %v204, 0
        %v392 = vsel %vm210, %v205, 0
        %v395 = vsel %vm210, %v206, 0
        %v398 = vsel %vm210, %v207, 0
        %v401 = vsel %vm210, %v208, 0
        %vm403 = vcmask 1045504
        %v405 = vsel %vm403, %v209, 0
        %407 = vmatprep.subr.mxu0 0.0
        %408 = vmatpush1.msra.mxu0 %v405
        %409 = vmatprep.subr.mxu0 0.0
        %410 = vmatpush1.msra.mxu0 0.0
        %411 = vmatprep.subr.mxu0 0.0
        %412 = vmatpush1.msra.mxu0 0.0
        %413 = vmatprep.subr.mxu0 0.0
        %414 = vmatpush1.msra.mxu0 0.0
        %415 = vmatprep.subr.mxu0 0.0
        %416 = vmatpush1.msra.mxu0 0.0
        %417 = vmatprep.subr.mxu0 0.0
        %418 = vmatpush1.msra.mxu0 0.0
        %419 = vmatprep.subr.mxu0 0.0
        %420 = vmatpush1.msra.mxu0 0.0
        %421 = vmatprep.subr.mxu0 0.0
        %422 = vmatpush1.msra.mxu0 0.0
        %423 = vmatprep.subr.mxu0 0.0
        %424 = vmatpush1.msra.mxu0 0.0
        %425 = vmatprep.subr.mxu0 0.0
        %426 = vmatpush1.msra.mxu0 0.0
        %427 = vmatprep.subr.mxu0 0.0
        %428 = vmatpush1.msra.mxu0 0.0
        %429 = vmatprep.subr.mxu0 0.0
        %430 = vmatpush1.msra.mxu0 0.0
        %431 = vmatprep.subr.mxu0 0.0
        %432 = vmatpush1.msra.mxu0 0.0
        %433 = vmatprep.subr.mxu0 0.0
        %434 = vmatpush1.msra.mxu0 0.0
        %435 = vmatprep.subr.mxu0 0.0
        %436 = vmatpush1.msra.mxu0 0.0
        %437 = vmatprep.subr.mxu0 0.0
        %438 = vmatpush1.msra.mxu0 0.0
        %439 = vmatprep.subr.mxu0 0.0
        %440 = vmatpush1.msra.mxu0 0.0
        %441 = vmatprep.subr.mxu0 0.0
        %442 = vmatpush1.msra.mxu0 0.0
        %443 = vmatprep.subr.mxu0 0.0
        %444 = vmatpush1.msra.mxu0 0.0
        %445 = vmatprep.subr.mxu0 0.0
        %446 = vmatpush1.msra.mxu0 0.0
        %447 = vmatprep.subr.mxu0 0.0
        %448 = vmatpush1.msra.mxu0 0.0
        %449 = vmatprep.subr.mxu0 0.0
        %450 = vmatpush1.msra.mxu0 0.0
        %451 = vmatprep.subr.mxu0 0.0
        %452 = vmatpush1.msra.mxu0 0.0
        %453 = vmatprep.subr.mxu0 0.0
        %454 = vmatpush1.msra.mxu0 0.0
        %455 = vmatprep.subr.mxu0 0.0
        %456 = vmatpush1.msra.mxu0 0.0
        %457 = vmatprep.subr.mxu0 0.0
        %458 = vmatpush1.msra.mxu0 0.0
        %459 = vmatprep.subr.mxu0 0.0
        %460 = vmatpush1.msra.mxu0 0.0
        %461 = vmatprep.subr.mxu0 0.0
        %462 = vmatpush1.msra.mxu0 0.0
        %463 = vmatprep.subr.mxu0 0.0
        %464 = vmatpush1.msra.mxu0 0.0
        %465 = vmatprep.subr.mxu0 0.0
        %466 = vmatpush1.msra.mxu0 0.0
        %467 = vmatprep.subr.mxu0 0.0
        %468 = vmatpush1.msra.mxu0 0.0
        %469 = vmatprep.subr.mxu0 0.0
        %470 = vmatpush1.msra.mxu0 0.0
        %471 = vmatprep.mubr.f32.mxu0 0.0
        %472 = vmatmul.mubr.f32.gmra.mrb[0].mxu0 %v212
        %v473 = vpop.f32.mrb[0].mxu0
        %v474 = vadd.f32 0.0, %v473
        %v475 = vpop.f32.mrb[0].mxu0
        %476 = vmatprep.mubr.f32.mxu0 0.0
        %477 = vmatmul.mubr.f32.gmra.mrb[0].mxu0 %v215
        %v478 = vpop.f32.mrb[0].mxu0
        %v479 = vadd.f32 0.0, %v478
        %v480 = vpop.f32.mrb[0].mxu0
        %481 = vmatprep.mubr.f32.mxu0 0.0
        %482 = vmatmul.mubr.f32.gmra.mrb[0].mxu0 %v218
        %v483 = vpop.f32.mrb[0].mxu0
        %v484 = vadd.f32 0.0, %v483
        %v485 = vpop.f32.mrb[0].mxu0
        %486 = vmatprep.mubr.f32.mxu0 0.0
        %487 = vmatmul.mubr.f32.gmra.mrb[0].mxu0 %v221
        %v488 = vpop.f32.mrb[0].mxu0
        %v489 = vadd.f32 0.0, %v488
        %v490 = vpop.f32.mrb[0].mxu0
        %491 = vmatprep.mubr.f32.mxu0 0.0
        %492 = vmatmul.mubr.f32.gmra.mrb[0].mxu0 %v224
        %v493 = vpop.f32.mrb[0].mxu0
        %v494 = vadd.f32 0.0, %v493
        %v495 = vpop.f32.mrb[0].mxu0
        %496 = vmatprep.mubr.f32.mxu0 0.0
        %497 = vmatmul.mubr.f32.gmra.mrb[0].mxu0 %v227
        %v498 = vpop.f32.mrb[0].mxu0
        %v499 = vadd.f32 0.0, %v498
        %v500 = vpop.f32.mrb[0].mxu0
        %501 = vmatprep.mubr.f32.mxu0 0.0
        %502 = vmatmul.mubr.f32.gmra.mrb[0].mxu0 %v230
        %v503 = vpop.f32.mrb[0].mxu0
        %v504 = vadd.f32 0.0, %v503
        %v505 = vpop.f32.mrb[0].mxu0
        %506 = vmatprep.mubr.f32.mxu0 0.0
        %507 = vmatmul.mubr.f32.gmra.mrb[0].mxu0 %v233
        %v508 = vpop.f32.mrb[0].mxu0
        %v509 = vadd.f32 0.0, %v508
        %v510 = vpop.f32.mrb[0].mxu0
        %511 = vmatprep.mubr.f32.mxu0 0.0
        %512 = vmatmul.mubr.f32.gmra.mrb[0].mxu0 %v236
        %v513 = vpop.f32.mrb[0].mxu0
        %v514 = vadd.f32 0.0, %v513
        %v515 = vpop.f32.mrb[0].mxu0
        %516 = vmatprep.mubr.f32.mxu0 0.0
        %517 = vmatmul.mubr.f32.gmra.mrb[0].mxu0 %v239
        %v518 = vpop.f32.mrb[0].mxu0
        %v519 = vadd.f32 0.0, %v518
        %v520 = vpop.f32.mrb[0].mxu0
        %521 = vmatprep.mubr.f32.mxu0 0.0
        %522 = vmatmul.mubr.f32.gmra.mrb[0].mxu0 %v242
        %v523 = vpop.f32.mrb[0].mxu0
        %v524 = vadd.f32 0.0, %v523
        %v525 = vpop.f32.mrb[0].mxu0
        %526 = vmatprep.mubr.f32.mxu0 0.0
        %527 = vmatmul.mubr.f32.gmra.mrb[0].mxu0 %v245
        %v528 = vpop.f32.mrb[0].mxu0
        %v529 = vadd.f32 0.0, %v528
        %v530 = vpop.f32.mrb[0].mxu0
        %531 = vmatprep.mubr.f32.mxu0 0.0
        %532 = vmatmul.mubr.f32.gmra.mrb[0].mxu0 %v248
        %v533 = vpop.f32.mrb[0].mxu0
        %v534 = vadd.f32 0.0, %v533
        %v535 = vpop.f32.mrb[0].mxu0
        %536 = vmatprep.mubr.f32.mxu0 0.0
        %537 = vmatmul.mubr.f32.gmra.mrb[0].mxu0 %v251
        %v538 = vpop.f32.mrb[0].mxu0
        %v539 = vadd.f32 0.0, %v538
        %v540 = vpop.f32.mrb[0].mxu0
        %541 = vmatprep.mubr.f32.mxu0 0.0
        %542 = vmatmul.mubr.f32.gmra.mrb[0].mxu0 %v254
        %v543 = vpop.f32.mrb[0].mxu0
        %v544 = vadd.f32 0.0, %v543
        %v545 = vpop.f32.mrb[0].mxu0
        %546 = vmatprep.mubr.f32.mxu0 0.0
        %547 = vmatmul.mubr.f32.gmra.mrb[0].mxu0 %v257
        %v548 = vpop.f32.mrb[0].mxu0
        %v549 = vadd.f32 0.0, %v548
        %v550 = vpop.f32.mrb[0].mxu0
        %551 = vmatprep.mubr.f32.mxu0 0.0
        %552 = vmatmul.mubr.f32.gmra.mrb[0].mxu0 %v260
        %v553 = vpop.f32.mrb[0].mxu0
        %v554 = vadd.f32 0.0, %v553
        %v555 = vpop.f32.mrb[0].mxu0
        %556 = vmatprep.mubr.f32.mxu0 0.0
        %557 = vmatmul.mubr.f32.gmra.mrb[0].mxu0 %v263
        %v558 = vpop.f32.mrb[0].mxu0
        %v559 = vadd.f32 0.0, %v558
        %v560 = vpop.f32.mrb[0].mxu0
        %561 = vmatprep.mubr.f32.mxu0 0.0
        %562 = vmatmul.mubr.f32.gmra.mrb[0].mxu0 %v266
        %v563 = vpop.f32.mrb[0].mxu0
        %v564 = vadd.f32 0.0, %v563
        %v565 = vpop.f32.mrb[0].mxu0
        %566 = vmatprep.mubr.f32.mxu0 0.0
        %567 = vmatmul.mubr.f32.gmra.mrb[0].mxu0 %v269
        %v568 = vpop.f32.mrb[0].mxu0
        %v569 = vadd.f32 0.0, %v568
        %v570 = vpop.f32.mrb[0].mxu0
        %571 = vmatprep.mubr.f32.mxu0 0.0
        %572 = vmatmul.mubr.f32.gmra.mrb[0].mxu0 %v272
        %v573 = vpop.f32.mrb[0].mxu0
        %v574 = vadd.f32 0.0, %v573
        %v575 = vpop.f32.mrb[0].mxu0
        %576 = vmatprep.mubr.f32.mxu0 0.0
        %577 = vmatmul.mubr.f32.gmra.mrb[0].mxu0 %v275
        %v578 = vpop.f32.mrb[0].mxu0
        %v579 = vadd.f32 0.0, %v578
        %v580 = vpop.f32.mrb[0].mxu0
        %581 = vmatprep.mubr.f32.mxu0 0.0
        %582 = vmatmul.mubr.f32.gmra.mrb[0].mxu0 %v278
        %v583 = vpop.f32.mrb[0].mxu0
        %v584 = vadd.f32 0.0, %v583
        %v585 = vpop.f32.mrb[0].mxu0
        %586 = vmatprep.mubr.f32.mxu0 0.0
        %587 = vmatmul.mubr.f32.gmra.mrb[0].mxu0 %v281
        %v588 = vpop.f32.mrb[0].mxu0
        %v589 = vadd.f32 0.0, %v588
        %v590 = vpop.f32.mrb[0].mxu0
        %591 = vmatprep.mubr.f32.mxu0 0.0
        %592 = vmatmul.mubr.f32.gmra.mrb[0].mxu0 %v284
        %v593 = vpop.f32.mrb[0].mxu0
        %v594 = vadd.f32 0.0, %v593
        %v595 = vpop.f32.mrb[0].mxu0
        %596 = vmatprep.mubr.f32.mxu0 0.0
        %597 = vmatmul.mubr.f32.gmra.mrb[0].mxu0 %v287
        %v598 = vpop.f32.mrb[0].mxu0
        %v599 = vadd.f32 0.0, %v598
        %v600 = vpop.f32.mrb[0].mxu0
        %601 = vmatprep.mubr.f32.mxu0 0.0
        %602 = vmatmul.mubr.f32.gmra.mrb[0].mxu0 %v290
        %v603 = vpop.f32.mrb[0].mxu0
        %v604 = vadd.f32 0.0, %v603
        %v605 = vpop.f32.mrb[0].mxu0
        %606 = vmatprep.mubr.f32.mxu0 0.0
        %607 = vmatmul.mubr.f32.gmra.mrb[0].mxu0 %v293
        %v608 = vpop.f32.mrb[0].mxu0
        %v609 = vadd.f32 0.0, %v608
        %v610 = vpop.f32.mrb[0].mxu0
        %611 = vmatprep.mubr.f32.mxu0 0.0
        %612 = vmatmul.mubr.f32.gmra.mrb[0].mxu0 %v296
        %v613 = vpop.f32.mrb[0].mxu0
        %v614 = vadd.f32 0.0, %v613
        %v615 = vpop.f32.mrb[0].mxu0
        %616 = vmatprep.mubr.f32.mxu0 0.0
        %617 = vmatmul.mubr.f32.gmra.mrb[0].mxu0 %v299
        %v618 = vpop.f32.mrb[0].mxu0
        %v619 = vadd.f32 0.0, %v618
        %v620 = vpop.f32.mrb[0].mxu0
        %621 = vmatprep.mubr.f32.mxu0 0.0
        %622 = vmatmul.mubr.f32.gmra.mrb[0].mxu0 %v302
        %v623 = vpop.f32.mrb[0].mxu0
        %v624 = vadd.f32 0.0, %v623
        %v625 = vpop.f32.mrb[0].mxu0
        %626 = vmatprep.mubr.f32.mxu0 0.0
        %627 = vmatmul.mubr.f32.gmra.mrb[0].mxu0 %v305
        %v628 = vpop.f32.mrb[0].mxu0
        %v629 = vadd.f32 0.0, %v628
        %v630 = vpop.f32.mrb[0].mxu0
        %631 = vmatprep.mubr.f32.mxu0 0.0
        %632 = vmatmul.mubr.f32.gmra.mrb[0].mxu0 %v308
        %v633 = vpop.f32.mrb[0].mxu0
        %v634 = vadd.f32 0.0, %v633
        %v635 = vpop.f32.mrb[0].mxu0
        %636 = vmatprep.mubr.f32.mxu0 0.0
        %637 = vmatmul.mubr.f32.gmra.mrb[0].mxu0 %v311
        %v638 = vpop.f32.mrb[0].mxu0
        %v639 = vadd.f32 0.0, %v638
        %v640 = vpop.f32.mrb[0].mxu0
        %641 = vmatprep.mubr.f32.mxu0 0.0
        %642 = vmatmul.mubr.f32.gmra.mrb[0].mxu0 %v314
        %v643 = vpop.f32.mrb[0].mxu0
        %v644 = vadd.f32 0.0, %v643
        %v645 = vpop.f32.mrb[0].mxu0
        %646 = vmatprep.mubr.f32.mxu0 0.0
        %647 = vmatmul.mubr.f32.gmra.mrb[0].mxu0 %v317
        %v648 = vpop.f32.mrb[0].mxu0
        %v649 = vadd.f32 0.0, %v648
        %v650 = vpop.f32.mrb[0].mxu0
        %651 = vmatprep.mubr.f32.mxu0 0.0
        %652 = vmatmul.mubr.f32.gmra.mrb[0].mxu0 %v320
        %v653 = vpop.f32.mrb[0].mxu0
        %v654 = vadd.f32 0.0, %v653
        %v655 = vpop.f32.mrb[0].mxu0
        %656 = vmatprep.mubr.f32.mxu0 0.0
        %657 = vmatmul.mubr.f32.gmra.mrb[0].mxu0 %v323
        %v658 = vpop.f32.mrb[0].mxu0
        %v659 = vadd.f32 0.0, %v658
        %v660 = vpop.f32.mrb[0].mxu0
        %661 = vmatprep.mubr.f32.mxu0 0.0
        %662 = vmatmul.mubr.f32.gmra.mrb[0].mxu0 %v326
        %v663 = vpop.f32.mrb[0].mxu0
        %v664 = vadd.f32 0.0, %v663
        %v665 = vpop.f32.mrb[0].mxu0
        %666 = vmatprep.mubr.f32.mxu0 0.0
        %667 = vmatmul.mubr.f32.gmra.mrb[0].mxu0 %v329
        %v668 = vpop.f32.mrb[0].mxu0
        %v669 = vadd.f32 0.0, %v668
        %v670 = vpop.f32.mrb[0].mxu0
        %671 = vmatprep.mubr.f32.mxu0 0.0
        %672 = vmatmul.mubr.f32.gmra.mrb[0].mxu0 %v332
        %v673 = vpop.f32.mrb[0].mxu0
        %v674 = vadd.f32 0.0, %v673
        %v675 = vpop.f32.mrb[0].mxu0
        %676 = vmatprep.mubr.f32.mxu0 0.0
        %677 = vmatmul.mubr.f32.gmra.mrb[0].mxu0 %v335
        %v678 = vpop.f32.mrb[0].mxu0
        %v679 = vadd.f32 0.0, %v678
        %v680 = vpop.f32.mrb[0].mxu0
        %681 = vmatprep.mubr.f32.mxu0 0.0
        %682 = vmatmul.mubr.f32.gmra.mrb[0].mxu0 %v338
        %v683 = vpop.f32.mrb[0].mxu0
        %v684 = vadd.f32 0.0, %v683
        %v685 = vpop.f32.mrb[0].mxu0
        %686 = vmatprep.mubr.f32.mxu0 0.0
        %687 = vmatmul.mubr.f32.gmra.mrb[0].mxu0 %v341
        %v688 = vpop.f32.mrb[0].mxu0
        %v689 = vadd.f32 0.0, %v688
        %v690 = vpop.f32.mrb[0].mxu0
        %691 = vmatprep.mubr.f32.mxu0 0.0
        %692 = vmatmul.mubr.f32.gmra.mrb[0].mxu0 %v344
        %v693 = vpop.f32.mrb[0].mxu0
        %v694 = vadd.f32 0.0, %v693
        %v695 = vpop.f32.mrb[0].mxu0
        %696 = vmatprep.mubr.f32.mxu0 0.0
        %697 = vmatmul.mubr.f32.gmra.mrb[0].mxu0 %v347
        %v698 = vpop.f32.mrb[0].mxu0
        %v699 = vadd.f32 0.0, %v698
        %v700 = vpop.f32.mrb[0].mxu0
        %701 = vmatprep.mubr.f32.mxu0 0.0
        %702 = vmatmul.mubr.f32.gmra.mrb[0].mxu0 %v350
        %v703 = vpop.f32.mrb[0].mxu0
        %v704 = vadd.f32 0.0, %v703
        %v705 = vpop.f32.mrb[0].mxu0
        %706 = vmatprep.mubr.f32.mxu0 0.0
        %707 = vmatmul.mubr.f32.gmra.mrb[0].mxu0 %v353
        %v708 = vpop.f32.mrb[0].mxu0
        %v709 = vadd.f32 0.0, %v708
        %v710 = vpop.f32.mrb[0].mxu0
        %711 = vmatprep.mubr.f32.mxu0 0.0
        %712 = vmatmul.mubr.f32.gmra.mrb[0].mxu0 %v356
        %v713 = vpop.f32.mrb[0].mxu0
        %v714 = vadd.f32 0.0, %v713
        %v715 = vpop.f32.mrb[0].mxu0
        %716 = vmatprep.mubr.f32.mxu0 0.0
        %717 = vmatmul.mubr.f32.gmra.mrb[0].mxu0 %v359
        %v718 = vpop.f32.mrb[0].mxu0
        %v719 = vadd.f32 0.0, %v718
        %v720 = vpop.f32.mrb[0].mxu0
        %721 = vmatprep.mubr.f32.mxu0 0.0
        %722 = vmatmul.mubr.f32.gmra.mrb[0].mxu0 %v362
        %v723 = vpop.f32.mrb[0].mxu0
        %v724 = vadd.f32 0.0, %v723
        %v725 = vpop.f32.mrb[0].mxu0
        %726 = vmatprep.mubr.f32.mxu0 0.0
        %727 = vmatmul.mubr.f32.gmra.mrb[0].mxu0 %v365
        %v728 = vpop.f32.mrb[0].mxu0
        %v729 = vadd.f32 0.0, %v728
        %v730 = vpop.f32.mrb[0].mxu0
        %731 = vmatprep.mubr.f32.mxu0 0.0
        %732 = vmatmul.mubr.f32.gmra.mrb[0].mxu0 %v368
        %v733 = vpop.f32.mrb[0].mxu0
        %v734 = vadd.f32 0.0, %v733
        %v735 = vpop.f32.mrb[0].mxu0
        %736 = vmatprep.mubr.f32.mxu0 0.0
        %737 = vmatmul.mubr.f32.gmra.mrb[0].mxu0 %v371
        %v738 = vpop.f32.mrb[0].mxu0
        %v739 = vadd.f32 0.0, %v738
        %v740 = vpop.f32.mrb[0].mxu0
        %741 = vmatprep.mubr.f32.mxu0 0.0
        %742 = vmatmul.mubr.f32.gmra.mrb[0].mxu0 %v374
        %v743 = vpop.f32.mrb[0].mxu0
        %v744 = vadd.f32 0.0, %v743
        %v745 = vpop.f32.mrb[0].mxu0
        %746 = vmatprep.mubr.f32.mxu0 0.0
        %747 = vmatmul.mubr.f32.gmra.mrb[0].mxu0 %v377
        %v748 = vpop.f32.mrb[0].mxu0
        %v749 = vadd.f32 0.0, %v748
        %v750 = vpop.f32.mrb[0].mxu0
        %751 = vmatprep.mubr.f32.mxu0 0.0
        %752 = vmatmul.mubr.f32.gmra.mrb[0].mxu0 %v380
        %v753 = vpop.f32.mrb[0].mxu0
        %v754 = vadd.f32 0.0, %v753
        %v755 = vpop.f32.mrb[0].mxu0
        %756 = vmatprep.mubr.f32.mxu0 0.0
        %757 = vmatmul.mubr.f32.gmra.mrb[0].mxu0 %v383
        %v758 = vpop.f32.mrb[0].mxu0
        %v759 = vadd.f32 0.0, %v758
        %v760 = vpop.f32.mrb[0].mxu0
        %761 = vmatprep.mubr.f32.mxu0 0.0
        %762 = vmatmul.mubr.f32.gmra.mrb[0].mxu0 %v386
        %v763 = vpop.f32.mrb[0].mxu0
        %v764 = vadd.f32 0.0, %v763
        %v765 = vpop.f32.mrb[0].mxu0
        %766 = vmatprep.mubr.f32.mxu0 0.0
        %767 = vmatmul.mubr.f32.gmra.mrb[0].mxu0 %v389
        %v768 = vpop.f32.mrb[0].mxu0
        %v769 = vadd.f32 0.0, %v768
        %v770 = vpop.f32.mrb[0].mxu0
        %771 = vmatprep.mubr.f32.mxu0 0.0
        %772 = vmatmul.mubr.f32.gmra.mrb[0].mxu0 %v392
        %v773 = vpop.f32.mrb[0].mxu0
        %v774 = vadd.f32 0.0, %v773
        %v775 = vpop.f32.mrb[0].mxu0
        %776 = vmatprep.mubr.f32.mxu0 0.0
        %777 = vmatmul.mubr.f32.gmra.mrb[0].mxu0 %v395
        %v778 = vpop.f32.mrb[0].mxu0
        %v779 = vadd.f32 0.0, %v778
        %v780 = vpop.f32.mrb[0].mxu0
        %781 = vmatprep.mubr.f32.mxu0 0.0
        %782 = vmatmul.mubr.f32.gmra.mrb[0].mxu0 %v398
        %v783 = vpop.f32.mrb[0].mxu0
        %v784 = vadd.f32 0.0, %v783
        %v785 = vpop.f32.mrb[0].mxu0
        %786 = vmatprep.mubr.f32.mxu0 0.0
        %787 = vmatmul.mubr.f32.gmra.mrb[0].mxu0 %v401
        %v788 = vpop.f32.mrb[0].mxu0
        %v789 = vadd.f32 0.0, %v788
        %v790 = vpop.f32.mrb[0].mxu0
        %791 = vdwg.mxu0
        %792 = vst [vmem:[%s137] sm:$0xff] %v474
        %793 = vst [vmem:[%s137 + $0x8] sm:$0xff] %v479
        %794 = vst [vmem:[%s137 + $0x10] sm:$0xff] %v484
        %795 = vst [vmem:[%s137 + $0x18] sm:$0xff] %v489
        %796 = vst [vmem:[%s137 + $0x20] sm:$0xff] %v494
        %797 = vst [vmem:[%s137 + $0x28] sm:$0xff] %v499
        %798 = vst [vmem:[%s137 + $0x30] sm:$0xff] %v504
        %799 = vst [vmem:[%s137 + $0x38] sm:$0xff] %v509
        %800 = vst [vmem:[%s137 + $0x40] sm:$0xff] %v514
        %801 = vst [vmem:[%s137 + $0x48] sm:$0xff] %v519
        %802 = vst [vmem:[%s137 + $0x50] sm:$0xff] %v524
        %803 = vst [vmem:[%s137 + $0x58] sm:$0xff] %v529
        %804 = vst [vmem:[%s137 + $0x60] sm:$0xff] %v534
        %805 = vst [vmem:[%s137 + $0x68] sm:$0xff] %v539
        %806 = vst [vmem:[%s137 + $0x70] sm:$0xff] %v544
        %807 = vst [vmem:[%s137 + $0x78] sm:$0xff] %v549
        %808 = vst [vmem:[%s137 + $0x80] sm:$0xff] %v554
        %809 = vst [vmem:[%s137 + $0x88] sm:$0xff] %v559
        %810 = vst [vmem:[%s137 + $0x90] sm:$0xff] %v564
        %811 = vst [vmem:[%s137 + $0x98] sm:$0xff] %v569
        %812 = vst [vmem:[%s137 + $0xa0] sm:$0xff] %v574
        %813 = vst [vmem:[%s137 + $0xa8] sm:$0xff] %v579
        %814 = vst [vmem:[%s137 + $0xb0] sm:$0xff] %v584
        %815 = vst [vmem:[%s137 + $0xb8] sm:$0xff] %v589
        %816 = vst [vmem:[%s137 + $0xc0] sm:$0xff] %v594
        %817 = vst [vmem:[%s137 + $0xc8] sm:$0xff] %v599
        %818 = vst [vmem:[%s137 + $0xd0] sm:$0xff] %v604
        %819 = vst [vmem:[%s137 + $0xd8] sm:$0xff] %v609
        %820 = vst [vmem:[%s137 + $0xe0] sm:$0xff] %v614
        %821 = vst [vmem:[%s137 + $0xe8] sm:$0xff] %v619
        %822 = vst [vmem:[%s137 + $0xf0] sm:$0xff] %v624
        %823 = vst [vmem:[%s137 + $0xf8] sm:$0xff] %v629
        %824 = vst [vmem:[%s137 + $0x100] sm:$0xff] %v634
        %825 = vst [vmem:[%s137 + $0x108] sm:$0xff] %v639
        %826 = vst [vmem:[%s137 + $0x110] sm:$0xff] %v644
        %827 = vst [vmem:[%s137 + $0x118] sm:$0xff] %v649
        %828 = vst [vmem:[%s137 + $0x120] sm:$0xff] %v654
        %829 = vst [vmem:[%s137 + $0x128] sm:$0xff] %v659
        %830 = vst [vmem:[%s137 + $0x130] sm:$0xff] %v664
        %831 = vst [vmem:[%s137 + $0x138] sm:$0xff] %v669
        %832 = vst [vmem:[%s137 + $0x140] sm:$0xff] %v674
        %833 = vst [vmem:[%s137 + $0x148] sm:$0xff] %v679
        %834 = vst [vmem:[%s137 + $0x150] sm:$0xff] %v684
        %835 = vst [vmem:[%s137 + $0x158] sm:$0xff] %v689
        %836 = vst [vmem:[%s137 + $0x160] sm:$0xff] %v694
        %837 = vst [vmem:[%s137 + $0x168] sm:$0xff] %v699
        %838 = vst [vmem:[%s137 + $0x170] sm:$0xff] %v704
        %839 = vst [vmem:[%s137 + $0x178] sm:$0xff] %v709
        %840 = vst [vmem:[%s137 + $0x180] sm:$0xff] %v714
        %841 = vst [vmem:[%s137 + $0x188] sm:$0xff] %v719
        %842 = vst [vmem:[%s137 + $0x190] sm:$0xff] %v724
        %843 = vst [vmem:[%s137 + $0x198] sm:$0xff] %v729
        %844 = vst [vmem:[%s137 + $0x1a0] sm:$0xff] %v734
        %845 = vst [vmem:[%s137 + $0x1a8] sm:$0xff] %v739
        %846 = vst [vmem:[%s137 + $0x1b0] sm:$0xff] %v744
        %847 = vst [vmem:[%s137 + $0x1b8] sm:$0xff] %v749
        %848 = vst [vmem:[%s137 + $0x1c0] sm:$0xff] %v754
        %849 = vst [vmem:[%s137 + $0x1c8] sm:$0xff] %v759
        %850 = vst [vmem:[%s137 + $0x1d0] sm:$0xff] %v764
        %851 = vst [vmem:[%s137 + $0x1d8] sm:$0xff] %v769
        %852 = vst [vmem:[%s137 + $0x1e0] sm:$0xff] %v774
        %853 = vst [vmem:[%s137 + $0x1e8] sm:$0xff] %v779
        %854 = vst [vmem:[%s137 + $0x1f0] sm:$0xff] %v784
        %855 = vst [vmem:[%s137 + $0x1f8] sm:$0xff] %v789
        %s856 = sand.u32 %s71, 1
        %s857 = scalar_lea.sflag [#allocation3], %s856
        %s858 = sand.u32 %s71, 1
        %s859 = smul.addr %s858, 512
        %s860 = scalar_lea.vmem [#allocation2], %s859
        // Predicated region
        $region29: #{tpu_custom_call.1} parent=27 // pred_check
          %p861 = pneg %p81
        $region30: #{tpu_custom_call.1} parent=27 // pred_check_branch
          %863 = sbr.rel (%p861) target = $region32
        $region31: #{tpu_custom_call.1} parent=27 // pred_region
          %s864 = smul.u32 64, %s16
          %s866 = ssub.s32 8192, 8192
          %867 = vsyncadd %s857, %s866
          %s868 = smul.addr %s864, 128
          %s869 = scalar_lea.hbm %s2, %s868
          %s870 = sshll.u32 %s860, 4
          %s871 = int_to_ptr.vmem [resolvable:$true] %s870
          %876 = dma.vmem_to_hbm [thread:$0]  %s871, 8192, %s869, %s857, 128, 128, 8
        $region32: #{tpu_custom_call.1} parent=27 // pred_fallthru
          _
      $region28: #{tpu_custom_call.1} parent=5 // pred_fallthru
        _
      %p877 = scmp.le.s32.totalorder 2, %s11
      // Predicated region
      $region33: #{tpu_custom_call.1} parent=5 // pred_check
        %p878 = pneg %p877
      $region34: #{tpu_custom_call.1} parent=5 // pred_check_branch
        %880 = sbr.rel (%p878) target = $region36
      $region35: #{tpu_custom_call.1} parent=5 // pred_region
        %s881 = ssub.s32 %s11, 2
        // Predicated region
        $region37: #{tpu_custom_call.1} parent=35 // pred_check
          %p882 = pneg %p87
        $region38: #{tpu_custom_call.1} parent=35 // pred_check_branch
          %884 = sbr.rel (%p882) target = $region40
        $region39: #{tpu_custom_call.1} parent=35 // pred_region
          %s885 = sand.u32 %s72, 1
          %s886 = scalar_lea.sflag [#allocation3], %s885
          %s887 = sand.u32 %s72, 1
          %s888 = smul.addr %s887, 512
          %s889 = scalar_lea.vmem [#allocation2], %s888
          %890 = dma.done %s886, 8192
        $region40: #{tpu_custom_call.1} parent=35 // pred_fallthru
          _
      $region36: #{tpu_custom_call.1} parent=5 // pred_fallthru
        _
    $region6: #{tpu_custom_call.1} parent=1 // loop_footer
      %s15 = sadd.s32 1, %s11
    $region7: #{tpu_custom_call.1} parent=1 // loop_footer_branch
      %10 = sbr.rel target = $region3
    $region8: #{tpu_custom_call.1} parent=1 // loop_exit
      _
    %891 = vsyncpa [#allocation3], 1
    %s892 = scalar_lea.sflag [#allocation3], 1
    %893 = vsyncpa %s892, 1

</llo_original>
